<compile_context>
chip_gen: v5e
topology: v5e:2x2
jax: 0.10.0
libtpu: 0.0.40
codegen_flags: <defaults>
</compile_context>

<pallas_src>
import math
from functools import partial

import jax
import jax.numpy as jnp
import numpy as np
from jax.experimental import pallas as pl
from jax.experimental.pallas import tpu as pltpu

LOG2PI = math.log(2.0 * math.pi)


# ----------------------------------------------------------------------------
# Fused kernel: diffusion chain + packed (decoder + T-1 p_dnn) MLPs + neg-ELBO.
# ----------------------------------------------------------------------------
def _codigem_fused_kernel(
    x_ref,       # [B, D]
    eps_ref,     # [T, B, D]        pre-drawn diffusion noise
    w1c_ref,     # [D, T*Mp]        layer-1 weights: [decoder | p_dnn 0 | ...]
    b1c_ref,     # [1, T*Mp]
    w2c_ref,     # [Mp, D*(2T-1)]   layer-2 weights: [dec | p0_mu p0_lv | p1_mu p1_lv | ...]
    b2c_ref,     # [1, D*(2T-1)]
    loss_ref,    # [1, 1]  output: reduced loss
    mux_ref,     # [B, D]  output: mu_x
    *,
    beta,
    T,
    D,
    B,
    Mp,
    loss_scale,
):
    sq1mb = math.sqrt(1.0 - beta)
    sqb = math.sqrt(beta)
    # Folded chain-KL constants:
    #   log_normal_diag(z, sq1mb*z, log b) - log_normal_diag(z, mu, lv)
    #     = c_chain - c2*z^2 + 0.5*lv + 0.5*exp(-lv)*(z-mu)^2
    #   log_normal_diag(z, sq1mb*z, log b) - log_standard_normal(z)
    #     = c_chain + (0.5 - c2)*z^2
    c2 = 0.5 * (1.0 - sq1mb) ** 2 / beta
    c_chain = -0.5 * math.log(beta)
    c_base = 0.5 - c2

    x = x_ref[...]

    # --- gaussian-diffusion chain; T is small & static, keep zs in registers ---
    zs = []
    z = sq1mb * x + sqb * eps_ref[0]
    zs.append(z)
    for i in range(1, T):
        z = sq1mb * z + sqb * eps_ref[i]
        zs.append(z)

    # --- layer 1: ONE packed matmul for decoder + all p_dnns -----------------
    # row-block 0 -> decoder on zs[0]; row-block s (1..T-1) -> p_dnn[s-1] on zs[s]
    z_stack = jnp.concatenate(zs, axis=0)                              # [T*B, D]
    h1 = jnp.dot(z_stack, w1c_ref[...], preferred_element_type=jnp.float32)
    h1 = h1 + b1c_ref[...]
    # diagonal blocks -> tanh -> restack (padding exact: tanh(0)=0)
    hs = [jnp.tanh(h1[s * B:(s + 1) * B, s * Mp:(s + 1) * Mp]) for s in range(T)]
    h_stack = jnp.concatenate(hs, axis=0)                              # [T*B, Mp]

    # --- layer 2: ONE packed matmul ------------------------------------------
    out2 = jnp.dot(h_stack, w2c_ref[...], preferred_element_type=jnp.float32)
    out2 = out2 + b2c_ref[...]                                         # [T*B, D*(2T-1)]

    mu_x = out2[0:B, 0:D]
    mux_ref[...] = mu_x

    # --- single lane-dense accumulator; ONE reduction at the very end --------
    dx = x - mu_x
    acc = (-0.5 * LOG2PI) - 0.5 * dx * dx                              # RE elementwise

    z_last = zs[T - 1]
    acc = acc - (c_chain + c_base * z_last * z_last)                   # base KL term

    # KL term for zs[j] uses p_dnns[T-2-j] applied to zs[T-1-j] (PyTorch pairing).
    for j in range(T - 1):
        i_dnn = T - 2 - j
        r = i_dnn + 1                                                  # LHS row block
        c0 = D * (1 + 2 * i_dnn)                                       # mu column start
        mu_j = out2[r * B:(r + 1) * B, c0:c0 + D]
        lv_j = out2[r * B:(r + 1) * B, c0 + D:c0 + 2 * D]
        zj = zs[j]
        dz = zj - mu_j
        acc = acc - (c_chain - c2 * zj * zj
                     + 0.5 * lv_j + 0.5 * jnp.exp(-lv_j) * dz * dz)

    loss_ref[...] = jnp.sum(acc, keepdims=True) * jnp.float32(-loss_scale)


# ----------------------------------------------------------------------------
# Parameter packing: lane-concatenate all per-step weights (padding M -> Mp).
# ----------------------------------------------------------------------------
def _round_up(v, m):
    return ((v + m - 1) // m) * m


def _pack_params(params):
    w1_list, b1_list, w2_list, b2_list = zip(*params["p_dnns"])
    dw1, db1, dw2, db2 = params["decoder"]
    D = dw1.shape[0]
    M = dw1.shape[1]
    Mp = max(128, _round_up(M, 128))
    pad = Mp - M

    def pad_w1(w1, b1):
        if pad:
            w1 = jnp.pad(w1, ((0, 0), (0, pad)))
            b1 = jnp.pad(b1, ((0, 0), (0, pad)))
        return w1, b1

    def pad_w2(w2):
        if pad:
            w2 = jnp.pad(w2, ((0, pad), (0, 0)))
        return w2

    # layer 1: [decoder | p_dnn 0 | ... | p_dnn T-2] along lanes  -> [D, T*Mp]
    w1_cols, b1_cols = [], []
    w1p, b1p = pad_w1(dw1, db1)
    w1_cols.append(w1p)
    b1_cols.append(b1p)
    for w1, b1 in zip(w1_list, b1_list):
        w1p, b1p = pad_w1(w1, b1)
        w1_cols.append(w1p)
        b1_cols.append(b1p)
    w1cat = jnp.concatenate(w1_cols, axis=1)
    b1cat = jnp.concatenate(b1_cols, axis=1)

    # layer 2: [dec (D) | p0 mu+lv (2D) | p1 mu+lv (2D) | ...] -> [Mp, D*(2T-1)]
    w2_cols = [pad_w2(dw2)]
    b2_cols = [db2]
    for w2, b2 in zip(w2_list, b2_list):
        w2_cols.append(pad_w2(w2))
        b2_cols.append(b2)
    w2cat = jnp.concatenate(w2_cols, axis=1)
    b2cat = jnp.concatenate(b2_cols, axis=1)

    return (w1cat, b1cat, w2cat, b2cat), Mp, D


# ----------------------------------------------------------------------------
# Full forward: ONE pallas_call.  eps is the pre-drawn diffusion noise
# (torch.randn_like equivalent), shape [T, B, D].
# ----------------------------------------------------------------------------
@partial(jax.jit, static_argnames=("beta", "T", "reduction"))
def codigem_forward(x, eps, params, *, beta, T, reduction="avg"):
    B, D = x.shape
    (w1cat, b1cat, w2cat, b2cat), Mp, _ = _pack_params(params)
    loss_scale = 1.0 / B if reduction != "sum" else 1.0

    n1 = T * Mp
    n2 = D * (2 * T - 1)
    flops = 2 * (T * B) * D * n1 + 2 * (T * B) * Mp * n2
    transcendentals = T * B * Mp + (T - 1) * B * D
    bytes_accessed = 4 * (x.size + eps.size + w1cat.size + b1cat.size
                          + w2cat.size + b2cat.size + B * D + 1)

    loss2d, mu_x = pl.pallas_call(
        partial(_codigem_fused_kernel, beta=beta, T=T, D=D, B=B, Mp=Mp,
                loss_scale=loss_scale),
        out_shape=(
            jax.ShapeDtypeStruct((1, 1), jnp.float32),
            jax.ShapeDtypeStruct((B, D), jnp.float32),
        ),
        grid=(1,),
        in_specs=[
            pl.BlockSpec((B, D), lambda i: (0, 0)),
            pl.BlockSpec((T, B, D), lambda i: (0, 0, 0)),
            pl.BlockSpec((D, n1), lambda i: (0, 0)),
            pl.BlockSpec((1, n1), lambda i: (0, 0)),
            pl.BlockSpec((Mp, n2), lambda i: (0, 0)),
            pl.BlockSpec((1, n2), lambda i: (0, 0)),
        ],
        out_specs=(
            pl.BlockSpec((1, 1), lambda i: (0, 0)),
            pl.BlockSpec((B, D), lambda i: (0, 0)),
        ),
        compiler_params=pltpu.CompilerParams(dimension_semantics=("arbitrary",)),
        cost_estimate=pl.CostEstimate(
            flops=flops,
            transcendentals=transcendentals,
            bytes_accessed=bytes_accessed,
        ),
    )(x, eps, w1cat, b1cat, w2cat, b2cat)

    return loss2d[0, 0], mu_x


# ----------------------------------------------------------------------------
# Pure-JAX reference (same math, same eps) for correctness checking.
# ----------------------------------------------------------------------------
def reference_forward(x, eps, params, beta, T, reduction="avg"):
    HI = jax.lax.Precision.HIGHEST
    sqa, sqb = math.sqrt(1.0 - beta), math.sqrt(beta)
    zs = [sqa * x + sqb * eps[0]]
    for i in range(1, T):
        zs.append(sqa * zs[-1] + sqb * eps[i])

    def mlp_ref(z, w1, b1, w2, b2):
        h = jnp.tanh(jnp.dot(z, w1, precision=HI) + b1)
        return jnp.dot(h, w2, precision=HI) + b2

    mus, lvs = [], []
    for i in range(T - 2, -1, -1):
        h = mlp_ref(zs[i + 1], *params["p_dnns"][i])
        mu_i, lv_i = jnp.split(h, 2, axis=1)
        mus.append(mu_i)
        lvs.append(lv_i)
    mu_x = mlp_ref(zs[0], *params["decoder"])

    def lsn(u):
        return -0.5 * LOG2PI - 0.5 * u ** 2

    def lnd(u, mu, lv):
        return -0.5 * LOG2PI - 0.5 * lv - 0.5 * jnp.exp(-lv) * (u - mu) ** 2

    RE = lsn(x - mu_x).sum(-1)
    KL = (lnd(zs[-1], sqa * zs[-1], math.log(beta)) - lsn(zs[-1])).sum(-1)
    for i in range(len(mus)):
        KL = KL + (lnd(zs[i], sqa * zs[i], math.log(beta))
                   - lnd(zs[i], mus[i], lvs[i])).sum(-1)
    if reduction == "sum":
        loss = -(RE - KL).sum()
    else:
        loss = -(RE - KL).mean()
    return loss, mu_x


def init_params(key, D, M, T, std=1e-4):
    def dense(k, fan_in, fan_out):
        kw, kb = jax.random.split(k)
        w = std * jax.random.normal(kw, (fan_in, fan_out), jnp.float32)
        b = std * jax.random.normal(kb, (1, fan_out), jnp.float32)
        return w, b

    keys = jax.random.split(key, 2 * (T - 1) + 2)
    p_dnns = []
    for i in range(T - 1):
        w1, b1 = dense(keys[2 * i], D, M)
        w2, b2 = dense(keys[2 * i + 1], M, 2 * D)
        p_dnns.append((w1, b1, w2, b2))
    dw1, db1 = dense(keys[-2], D, M)
    dw2, db2 = dense(keys[-1], M, D)
    return {"p_dnns": p_dnns, "decoder": (dw1, db1, dw2, db2)}


if __name__ == "__main__":
    B, D, M, T = 8, 128, 64, 3
    beta = 0.1

    key = jax.random.PRNGKey(0)
    k_x, k_eps, k_params = jax.random.split(key, 3)

    x = jax.random.normal(k_x, (B, D), jnp.float32)
    # pre-drawn diffusion noise (torch.randn_like equivalent)
    eps = jax.random.normal(k_eps, (T, B, D), jnp.float32)
    params = init_params(k_params, D, M, T)

    loss, mu_x = codigem_forward(x, eps, params, beta=beta, T=T, reduction="avg")
    loss = jax.block_until_ready(loss)
    mu_x = jax.block_until_ready(mu_x)

    ref_loss, ref_mu_x = reference_forward(x, eps, params, beta, T, reduction="avg")
    np.testing.assert_allclose(np.asarray(loss), np.asarray(ref_loss),
                               rtol=5e-4, atol=5e-3)
    np.testing.assert_allclose(np.asarray(mu_x), np.asarray(ref_mu_x),
                               rtol=1e-3, atol=1e-5)

    print("KERNEL_OK")
</pallas_src>

<mosaic_0001>
module attributes {stable_mosaic.version = 11 : i64} {
  func.func @_codigem_fused_kernel(%arg0: i32, %arg1: memref<8x128xf32, #tpu.memory_space<vmem>>, %arg2: memref<3x8x128xf32, #tpu.memory_space<vmem>>, %arg3: memref<128x384xf32, #tpu.memory_space<vmem>>, %arg4: memref<1x384xf32, #tpu.memory_space<vmem>>, %arg5: memref<128x640xf32, #tpu.memory_space<vmem>>, %arg6: memref<1x640xf32, #tpu.memory_space<vmem>>, %arg7: memref<1x1xf32, #tpu.memory_space<vmem>>, %arg8: memref<8x128xf32, #tpu.memory_space<vmem>>) attributes {dimension_semantics = [#tpu.dimension_semantics<arbitrary>], iteration_bounds = array<i64: 1>, scalar_prefetch = 0 : i64, scratch_operands = 0 : i64, tpu.core_type = #tpu.core_type<tc>, window_params = [{pipeline_mode = #tpu.pipeline_mode<synchronous>, transform_indices = @transform_0, window_bounds = array<i64: 8, 128>}, {pipeline_mode = #tpu.pipeline_mode<synchronous>, transform_indices = @transform_1, window_bounds = array<i64: 3, 8, 128>}, {pipeline_mode = #tpu.pipeline_mode<synchronous>, transform_indices = @transform_2, window_bounds = array<i64: 128, 384>}, {pipeline_mode = #tpu.pipeline_mode<synchronous>, transform_indices = @transform_3, window_bounds = array<i64: 1, 384>}, {pipeline_mode = #tpu.pipeline_mode<synchronous>, transform_indices = @transform_4, window_bounds = array<i64: 128, 640>}, {pipeline_mode = #tpu.pipeline_mode<synchronous>, transform_indices = @transform_5, window_bounds = array<i64: 1, 640>}, {pipeline_mode = #tpu.pipeline_mode<synchronous>, transform_indices = @transform_6, window_bounds = array<i64: 1, 1>}, {pipeline_mode = #tpu.pipeline_mode<synchronous>, transform_indices = @transform_7, window_bounds = array<i64: 8, 128>}]} {
    %c0 = arith.constant 0 : index
    %c0_0 = arith.constant 0 : index
    %0 = vector.load %arg1[%c0, %c0_0] : memref<8x128xf32, #tpu.memory_space<vmem>>, vector<8x128xf32>
    %cst = arith.constant 0.948683321 : f32
    %1 = vector.broadcast %cst : f32 to vector<8x128xf32>
    %2 = arith.mulf %1, %0 : vector<8x128xf32>
    %c0_1 = arith.constant 0 : index
    %c0_2 = arith.constant 0 : index
    %c0_3 = arith.constant 0 : index
    %3 = vector.load %arg2[%c0_1, %c0_2, %c0_3] : memref<3x8x128xf32, #tpu.memory_space<vmem>>, vector<1x8x128xf32>
    %4 = vector.shape_cast %3 : vector<1x8x128xf32> to vector<8x128xf32>
    %cst_4 = arith.constant 0.316227764 : f32
    %5 = vector.broadcast %cst_4 : f32 to vector<8x128xf32>
    %6 = arith.mulf %5, %4 : vector<8x128xf32>
    %7 = arith.addf %2, %6 : vector<8x128xf32>
    %cst_5 = arith.constant 0.948683321 : f32
    %8 = vector.broadcast %cst_5 : f32 to vector<8x128xf32>
    %9 = arith.mulf %8, %7 : vector<8x128xf32>
    %c1 = arith.constant 1 : index
    %c0_6 = arith.constant 0 : index
    %c0_7 = arith.constant 0 : index
    %10 = vector.load %arg2[%c1, %c0_6, %c0_7] : memref<3x8x128xf32, #tpu.memory_space<vmem>>, vector<1x8x128xf32>
    %11 = vector.shape_cast %10 : vector<1x8x128xf32> to vector<8x128xf32>
    %cst_8 = arith.constant 0.316227764 : f32
    %12 = vector.broadcast %cst_8 : f32 to vector<8x128xf32>
    %13 = arith.mulf %12, %11 : vector<8x128xf32>
    %14 = arith.addf %9, %13 : vector<8x128xf32>
    %cst_9 = arith.constant 0.948683321 : f32
    %15 = vector.broadcast %cst_9 : f32 to vector<8x128xf32>
    %16 = arith.mulf %15, %14 : vector<8x128xf32>
    %c2 = arith.constant 2 : index
    %c0_10 = arith.constant 0 : index
    %c0_11 = arith.constant 0 : index
    %17 = vector.load %arg2[%c2, %c0_10, %c0_11] : memref<3x8x128xf32, #tpu.memory_space<vmem>>, vector<1x8x128xf32>
    %18 = vector.shape_cast %17 : vector<1x8x128xf32> to vector<8x128xf32>
    %cst_12 = arith.constant 0.316227764 : f32
    %19 = vector.broadcast %cst_12 : f32 to vector<8x128xf32>
    %20 = arith.mulf %19, %18 : vector<8x128xf32>
    %21 = arith.addf %16, %20 : vector<8x128xf32>
    %22 = tpu.concatenate %7, %14, %21 in 0 : vector<8x128xf32>, vector<8x128xf32>, vector<8x128xf32> -> vector<24x128xf32>
    %c0_13 = arith.constant 0 : index
    %c0_14 = arith.constant 0 : index
    %23 = vector.load %arg3[%c0_13, %c0_14] : memref<128x384xf32, #tpu.memory_space<vmem>>, vector<128x384xf32>
    %cst_15 = arith.constant dense<0.000000e+00> : vector<24x384xf32>
    %24 = tpu.matmul %22, %23, %cst_15 {dimension_numbers = #tpu.dot_dimension_numbers<[1], [0], [0], [1], [0, 0, 1, 1], [], []>} : vector<24x128xf32>, vector<128x384xf32>, vector<24x384xf32> -> vector<24x384xf32>
    %c0_16 = arith.constant 0 : index
    %c0_17 = arith.constant 0 : index
    %25 = vector.load %arg4[%c0_16, %c0_17] : memref<1x384xf32, #tpu.memory_space<vmem>>, vector<1x384xf32>
    %26 = vector.broadcast %25 : vector<1x384xf32> to vector<24x384xf32>
    %27 = arith.addf %24, %26 : vector<24x384xf32>
    %28 = vector.extract_strided_slice %27 {offsets = [0, 0], sizes = [8, 128], strides = [1, 1]} : vector<24x384xf32> to vector<8x128xf32>
    %29 = math.tanh %28 : vector<8x128xf32>
    %30 = vector.extract_strided_slice %27 {offsets = [8, 128], sizes = [8, 128], strides = [1, 1]} : vector<24x384xf32> to vector<8x128xf32>
    %31 = math.tanh %30 : vector<8x128xf32>
    %32 = vector.extract_strided_slice %27 {offsets = [16, 256], sizes = [8, 128], strides = [1, 1]} : vector<24x384xf32> to vector<8x128xf32>
    %33 = math.tanh %32 : vector<8x128xf32>
    %34 = tpu.concatenate %29, %31, %33 in 0 : vector<8x128xf32>, vector<8x128xf32>, vector<8x128xf32> -> vector<24x128xf32>
    %c0_18 = arith.constant 0 : index
    %c0_19 = arith.constant 0 : index
    %35 = vector.load %arg5[%c0_18, %c0_19] : memref<128x640xf32, #tpu.memory_space<vmem>>, vector<128x640xf32>
    %cst_20 = arith.constant dense<0.000000e+00> : vector<24x640xf32>
    %36 = tpu.matmul %34, %35, %cst_20 {dimension_numbers = #tpu.dot_dimension_numbers<[1], [0], [0], [1], [0, 0, 1, 1], [], []>} : vector<24x128xf32>, vector<128x640xf32>, vector<24x640xf32> -> vector<24x640xf32>
    %c0_21 = arith.constant 0 : index
    %c0_22 = arith.constant 0 : index
    %37 = vector.load %arg6[%c0_21, %c0_22] : memref<1x640xf32, #tpu.memory_space<vmem>>, vector<1x640xf32>
    %38 = vector.broadcast %37 : vector<1x640xf32> to vector<24x640xf32>
    %39 = arith.addf %36, %38 : vector<24x640xf32>
    %40 = vector.extract_strided_slice %39 {offsets = [0, 0], sizes = [8, 128], strides = [1, 1]} : vector<24x640xf32> to vector<8x128xf32>
    %c0_23 = arith.constant 0 : index
    %c0_24 = arith.constant 0 : index
    %41 = vector.load %arg8[%c0_23, %c0_24] : memref<8x128xf32, #tpu.memory_space<vmem>>, vector<8x128xf32>
    tpu.vector_store %arg8[%c0_23, %c0_24], %40 {strides = array<i32>} : memref<8x128xf32, #tpu.memory_space<vmem>>, vector<8x128xf32>,
    %42 = arith.subf %0, %40 : vector<8x128xf32>
    %cst_25 = arith.constant 5.000000e-01 : f32
    %43 = vector.broadcast %cst_25 : f32 to vector<8x128xf32>
    %44 = arith.mulf %43, %42 : vector<8x128xf32>
    %45 = arith.mulf %44, %42 : vector<8x128xf32>
    %cst_26 = arith.constant -0.918938517 : f32
    %46 = vector.broadcast %cst_26 : f32 to vector<8x128xf32>
    %47 = arith.subf %46, %45 : vector<8x128xf32>
    %cst_27 = arith.constant 0.486832976 : f32
    %48 = vector.broadcast %cst_27 : f32 to vector<8x128xf32>
    %49 = arith.mulf %48, %21 : vector<8x128xf32>
    %50 = arith.mulf %49, %21 : vector<8x128xf32>
    %cst_28 = arith.constant 1.15129256 : f32
    %51 = vector.broadcast %cst_28 : f32 to vector<8x128xf32>
    %52 = arith.addf %51, %50 : vector<8x128xf32>
    %53 = arith.subf %47, %52 : vector<8x128xf32>
    %54 = vector.extract_strided_slice %39 {offsets = [16, 384], sizes = [8, 128], strides = [1, 1]} : vector<24x640xf32> to vector<8x128xf32>
    %55 = vector.extract_strided_slice %39 {offsets = [16, 512], sizes = [8, 128], strides = [1, 1]} : vector<24x640xf32> to vector<8x128xf32>
    %56 = arith.subf %7, %54 : vector<8x128xf32>
    %cst_29 = arith.constant 0.0131670199 : f32
    %57 = vector.broadcast %cst_29 : f32 to vector<8x128xf32>
    %58 = arith.mulf %57, %7 : vector<8x128xf32>
    %59 = arith.mulf %58, %7 : vector<8x128xf32>
    %cst_30 = arith.constant 1.15129256 : f32
    %60 = vector.broadcast %cst_30 : f32 to vector<8x128xf32>
    %61 = arith.subf %60, %59 : vector<8x128xf32>
    %cst_31 = arith.constant 5.000000e-01 : f32
    %62 = vector.broadcast %cst_31 : f32 to vector<8x128xf32>
    %63 = arith.mulf %62, %55 : vector<8x128xf32>
    %64 = arith.addf %61, %63 : vector<8x128xf32>
    %cst_32 = arith.constant 0.000000e+00 : f32
    %65 = vector.broadcast %cst_32 : f32 to vector<8x128xf32>
    %66 = arith.subf %65, %55 : vector<8x128xf32>
    %67 = math.exp %66 : vector<8x128xf32>
    %cst_33 = arith.constant 5.000000e-01 : f32
    %68 = vector.broadcast %cst_33 : f32 to vector<8x128xf32>
    %69 = arith.mulf %68, %67 : vector<8x128xf32>
    %70 = arith.mulf %69, %56 : vector<8x128xf32>
    %71 = arith.mulf %70, %56 : vector<8x128xf32>
    %72 = arith.addf %64, %71 : vector<8x128xf32>
    %73 = arith.subf %53, %72 : vector<8x128xf32>
    %74 = vector.extract_strided_slice %39 {offsets = [8, 128], sizes = [8, 128], strides = [1, 1]} : vector<24x640xf32> to vector<8x128xf32>
    %75 = vector.extract_strided_slice %39 {offsets = [8, 256], sizes = [8, 128], strides = [1, 1]} : vector<24x640xf32> to vector<8x128xf32>
    %76 = arith.subf %14, %74 : vector<8x128xf32>
    %cst_34 = arith.constant 0.0131670199 : f32
    %77 = vector.broadcast %cst_34 : f32 to vector<8x128xf32>
    %78 = arith.mulf %77, %14 : vector<8x128xf32>
    %79 = arith.mulf %78, %14 : vector<8x128xf32>
    %cst_35 = arith.constant 1.15129256 : f32
    %80 = vector.broadcast %cst_35 : f32 to vector<8x128xf32>
    %81 = arith.subf %80, %79 : vector<8x128xf32>
    %cst_36 = arith.constant 5.000000e-01 : f32
    %82 = vector.broadcast %cst_36 : f32 to vector<8x128xf32>
    %83 = arith.mulf %82, %75 : vector<8x128xf32>
    %84 = arith.addf %81, %83 : vector<8x128xf32>
    %cst_37 = arith.constant 0.000000e+00 : f32
    %85 = vector.broadcast %cst_37 : f32 to vector<8x128xf32>
    %86 = arith.subf %85, %75 : vector<8x128xf32>
    %87 = math.exp %86 : vector<8x128xf32>
    %cst_38 = arith.constant 5.000000e-01 : f32
    %88 = vector.broadcast %cst_38 : f32 to vector<8x128xf32>
    %89 = arith.mulf %88, %87 : vector<8x128xf32>
    %90 = arith.mulf %89, %76 : vector<8x128xf32>
    %91 = arith.mulf %90, %76 : vector<8x128xf32>
    %92 = arith.addf %84, %91 : vector<8x128xf32>
    %93 = arith.subf %73, %92 : vector<8x128xf32>
    %94 = vector.shape_cast %93 : vector<8x128xf32> to vector<1x8x128xf32>
    %cst_39 = arith.constant dense<0.000000e+00> : vector<1xf32>
    %95 = vector.multi_reduction <add>, %94, %cst_39 [1, 2] : vector<1x8x128xf32> to vector<1xf32>
    %96 = vector.shape_cast %95 : vector<1xf32> to vector<1x1x1xf32>
    %97 = vector.extract %96[0, 0, 0] : f32 from vector<1x1x1xf32>
    %98 = vector.broadcast %97 : f32 to vector<1x1xf32>
    %cst_40 = arith.constant -1.250000e-01 : f32
    %99 = vector.broadcast %cst_40 : f32 to vector<1x1xf32>
    %100 = arith.mulf %98, %99 : vector<1x1xf32>
    %c0_41 = arith.constant 0 : index
    %c0_42 = arith.constant 0 : index
    %101 = vector.load %arg7[%c0_41, %c0_42] : memref<1x1xf32, #tpu.memory_space<vmem>>, vector<1x1xf32>
    tpu.vector_store %arg7[%c0_41, %c0_42], %100 {strides = array<i32>} : memref<1x1xf32, #tpu.memory_space<vmem>>, vector<1x1xf32>,
    return
  }
  func.func @transform_0(%arg0: i32) -> (i32, i32) {
    %c0_i32 = arith.constant 0 : i32
    %c0_i32_0 = arith.constant 0 : i32
    %c0_i32_1 = arith.constant 0 : i32
    return %c0_i32, %c0_i32_0 : i32, i32
  }
  func.func @transform_1(%arg0: i32) -> (i32, i32, i32) {
    %c0_i32 = arith.constant 0 : i32
    %c0_i32_0 = arith.constant 0 : i32
    %c0_i32_1 = arith.constant 0 : i32
    %c0_i32_2 = arith.constant 0 : i32
    return %c0_i32, %c0_i32_0, %c0_i32_1 : i32, i32, i32
  }
  func.func @transform_2(%arg0: i32) -> (i32, i32) {
    %c0_i32 = arith.constant 0 : i32
    %c0_i32_0 = arith.constant 0 : i32
    %c0_i32_1 = arith.constant 0 : i32
    return %c0_i32, %c0_i32_0 : i32, i32
  }
  func.func @transform_3(%arg0: i32) -> (i32, i32) {
    %c0_i32 = arith.constant 0 : i32
    %c0_i32_0 = arith.constant 0 : i32
    %c0_i32_1 = arith.constant 0 : i32
    return %c0_i32, %c0_i32_0 : i32, i32
  }
  func.func @transform_4(%arg0: i32) -> (i32, i32) {
    %c0_i32 = arith.constant 0 : i32
    %c0_i32_0 = arith.constant 0 : i32
    %c0_i32_1 = arith.constant 0 : i32
    return %c0_i32, %c0_i32_0 : i32, i32
  }
  func.func @transform_5(%arg0: i32) -> (i32, i32) {
    %c0_i32 = arith.constant 0 : i32
    %c0_i32_0 = arith.constant 0 : i32
    %c0_i32_1 = arith.constant 0 : i32
    return %c0_i32, %c0_i32_0 : i32, i32
  }
  func.func @transform_6(%arg0: i32) -> (i32, i32) {
    %c0_i32 = arith.constant 0 : i32
    %c0_i32_0 = arith.constant 0 : i32
    %c0_i32_1 = arith.constant 0 : i32
    return %c0_i32, %c0_i32_0 : i32, i32
  }
  func.func @transform_7(%arg0: i32) -> (i32, i32) {
    %c0_i32 = arith.constant 0 : i32
    %c0_i32_0 = arith.constant 0 : i32
    %c0_i32_1 = arith.constant 0 : i32
    return %c0_i32, %c0_i32_0 : i32, i32
  }
}

</mosaic_0001>

<llo_original>
// kernel: codigem_forward.1
$region0: #{codigem_forward.1}
  #allocation0 [shape = 'u32[]', space=smem, size = 0x4, offset = 0x4, fixed_abs, tag = 'smem constant byte address 0x4 - core index']
  #allocation1 [shape = 'u32[72,128]{1,0:T(1,128)}', space=vmem, size = 0x9000, scoped, tag = 'internal scratch']
  %s0 = inlined_call_operand.vmem [shape: f32[8,128], index: 0, kind: input, shape index: {}]
  %s1 = inlined_call_operand.vmem [shape: f32[3,8,128], index: 1, kind: input, shape index: {}]
  %s2 = inlined_call_operand.vmem [shape: f32[128,384], index: 2, kind: input, shape index: {}]
  %s3 = inlined_call_operand.vmem [shape: f32[1,384], index: 3, kind: input, shape index: {}]
  %s4 = inlined_call_operand.vmem [shape: f32[128,640], index: 4, kind: input, shape index: {}]
  %s5 = inlined_call_operand.vmem [shape: f32[1,640], index: 5, kind: input, shape index: {}]
  %s6 = inlined_call_operand.hbm [shape: f32[1,1], index: 6, kind: output, shape index: {0}]
  %s7 = inlined_call_operand.hbm [shape: f32[8,128], index: 7, kind: output, shape index: {1}]
  %8 = xla_tuple %s6, %s7
  %s9 = sld [smem:[#allocation0]]
  $region42: #{codigem_forward.1} parent=0
    _
  %s11 = ssub.s32 1, %s9
  %s12 = scalar_select 0, %s11, %s9
  $region1: #{codigem_forward.1} parent=0
    #allocation2 [shape = 'u8[512]{0}', space=vmem, size = 0x400, scoped, tag = 'output window, operand 0, single buffered']
    #allocation3 [shape = 's32[1]{0}', space=sflag, size = 0x4, scoped, tag = 'scoped memory for codigem_forward.1']
    #allocation4 [shape = 'u8[4096]{0}', space=vmem, size = 0x1000, scoped, tag = 'output window, operand 1, single buffered']
    #allocation5 [shape = 's32[1]{0}', space=sflag, size = 0x4, scoped, tag = 'scoped memory for codigem_forward.1']
    %13 = vsyncpa [#allocation3], 0
    %14 = vsyncpa [#allocation5], 0
    // Predicated region
    $region2: #{codigem_forward.1} parent=1 // pred_check
      _
    $region3: #{codigem_forward.1} parent=1 // pred_check_branch
      %16 = sbr.rel (0) target = $region5
    $region4: #{codigem_forward.1} parent=1 // pred_region
      _
    $region5: #{codigem_forward.1} parent=1 // pred_fallthru
      _
    // Predicated region
    $region6: #{codigem_forward.1} parent=1 // pred_check
      _
    $region7: #{codigem_forward.1} parent=1 // pred_check_branch
      %18 = sbr.rel (0) target = $region9
    $region8: #{codigem_forward.1} parent=1 // pred_region
      _
    $region9: #{codigem_forward.1} parent=1 // pred_fallthru
      _
    // Predicated region
    $region10: #{codigem_forward.1} parent=1 // pred_check
      _
    $region11: #{codigem_forward.1} parent=1 // pred_check_branch
      %20 = sbr.rel (0) target = $region13
    $region12: #{codigem_forward.1} parent=1 // pred_region
      _
    $region13: #{codigem_forward.1} parent=1 // pred_fallthru
      _
    // Predicated region
    $region14: #{codigem_forward.1} parent=1 // pred_check
      _
    $region15: #{codigem_forward.1} parent=1 // pred_check_branch
      %22 = sbr.rel (0) target = $region17
    $region16: #{codigem_forward.1} parent=1 // pred_region
      _
    $region17: #{codigem_forward.1} parent=1 // pred_fallthru
      _
    // Predicated region
    $region18: #{codigem_forward.1} parent=1 // pred_check
      _
    $region19: #{codigem_forward.1} parent=1 // pred_check_branch
      %24 = sbr.rel (0) target = $region21
    $region20: #{codigem_forward.1} parent=1 // pred_region
      _
    $region21: #{codigem_forward.1} parent=1 // pred_fallthru
      _
    // Predicated region
    $region22: #{codigem_forward.1} parent=1 // pred_check
      _
    $region23: #{codigem_forward.1} parent=1 // pred_check_branch
      %26 = sbr.rel (0) target = $region25
    $region24: #{codigem_forward.1} parent=1 // pred_region
      _
    $region25: #{codigem_forward.1} parent=1 // pred_fallthru
      _
    %v27 = vld [vmem:[%s0] sm:$0xff]
    %v28 = vmul.f32 %v27, 0.9486833
    %v29 = vld [vmem:[%s1] sm:$0xff]
    %v30 = vmul.f32 %v29, 0.31622776
    %v31 = vadd.f32 %v28, %v30
    %v32 = vmul.f32 %v31, 0.9486833
    %s33 = scalar_lea.vmem %s1, 8
    %v34 = vld [vmem:[%s33] sm:$0xff]
    %v35 = vmul.f32 %v34, 0.31622776
    %v36 = vadd.f32 %v32, %v35
    %v37 = vmul.f32 %v36, 0.9486833
    %s38 = scalar_lea.vmem %s1, 16
    %v39 = vld [vmem:[%s38] sm:$0xff]
    %v40 = vmul.f32 %v39, 0.31622776
    %v41 = vadd.f32 %v37, %v40
    %v42 = vld [vmem:[%s2] sm:$0xff]
    %v43 = vld [vmem:[%s2 + $0x8] sm:$0xff]
    %v44 = vld [vmem:[%s2 + $0x10] sm:$0xff]
    %v45 = vld [vmem:[%s2 + $0x18] sm:$0xff]
    %v46 = vld [vmem:[%s2 + $0x20] sm:$0xff]
    %v47 = vld [vmem:[%s2 + $0x28] sm:$0xff]
    %v48 = vld [vmem:[%s2 + $0x30] sm:$0xff]
    %v49 = vld [vmem:[%s2 + $0x38] sm:$0xff]
    %v50 = vld [vmem:[%s2 + $0x40] sm:$0xff]
    %v51 = vld [vmem:[%s2 + $0x48] sm:$0xff]
    %v52 = vld [vmem:[%s2 + $0x50] sm:$0xff]
    %v53 = vld [vmem:[%s2 + $0x58] sm:$0xff]
    %v54 = vld [vmem:[%s2 + $0x60] sm:$0xff]
    %v55 = vld [vmem:[%s2 + $0x68] sm:$0xff]
    %v56 = vld [vmem:[%s2 + $0x70] sm:$0xff]
    %v57 = vld [vmem:[%s2 + $0x78] sm:$0xff]
    %v58 = vld [vmem:[%s2 + $0x80] sm:$0xff]
    %v59 = vld [vmem:[%s2 + $0x88] sm:$0xff]
    %v60 = vld [vmem:[%s2 + $0x90] sm:$0xff]
    %v61 = vld [vmem:[%s2 + $0x98] sm:$0xff]
    %v62 = vld [vmem:[%s2 + $0xa0] sm:$0xff]
    %v63 = vld [vmem:[%s2 + $0xa8] sm:$0xff]
    %v64 = vld [vmem:[%s2 + $0xb0] sm:$0xff]
    %v65 = vld [vmem:[%s2 + $0xb8] sm:$0xff]
    %v66 = vld [vmem:[%s2 + $0xc0] sm:$0xff]
    %v67 = vld [vmem:[%s2 + $0xc8] sm:$0xff]
    %v68 = vld [vmem:[%s2 + $0xd0] sm:$0xff]
    %v69 = vld [vmem:[%s2 + $0xd8] sm:$0xff]
    %v70 = vld [vmem:[%s2 + $0xe0] sm:$0xff]
    %v71 = vld [vmem:[%s2 + $0xe8] sm:$0xff]
    %v72 = vld [vmem:[%s2 + $0xf0] sm:$0xff]
    %v73 = vld [vmem:[%s2 + $0xf8] sm:$0xff]
    %v74 = vld [vmem:[%s2 + $0x100] sm:$0xff]
    %v75 = vld [vmem:[%s2 + $0x108] sm:$0xff]
    %v76 = vld [vmem:[%s2 + $0x110] sm:$0xff]
    %v77 = vld [vmem:[%s2 + $0x118] sm:$0xff]
    %v78 = vld [vmem:[%s2 + $0x120] sm:$0xff]
    %v79 = vld [vmem:[%s2 + $0x128] sm:$0xff]
    %v80 = vld [vmem:[%s2 + $0x130] sm:$0xff]
    %v81 = vld [vmem:[%s2 + $0x138] sm:$0xff]
    %v82 = vld [vmem:[%s2 + $0x140] sm:$0xff]
    %v83 = vld [vmem:[%s2 + $0x148] sm:$0xff]
    %v84 = vld [vmem:[%s2 + $0x150] sm:$0xff]
    %v85 = vld [vmem:[%s2 + $0x158] sm:$0xff]
    %v86 = vld [vmem:[%s2 + $0x160] sm:$0xff]
    %v87 = vld [vmem:[%s2 + $0x168] sm:$0xff]
    %v88 = vld [vmem:[%s2 + $0x170] sm:$0xff]
    %v89 = vld [vmem:[%s2 + $0x178] sm:$0xff]
    %v90 = vld [vmem:[%s3] sm:$0x7]
    %v92 = vperm.slane %v90, 0
    %v93 = vperm.slane %v90, 1
    %v94 = vperm.slane %v90, 2
    %98 = vmatpush.msra.mxu0 %v87
    %99 = vmatpush.msra.mxu0 %v84
    %100 = vmatpush.msra.mxu0 %v81
    %101 = vmatpush.msra.mxu0 %v78
    %102 = vmatpush.msra.mxu0 %v75
    %103 = vmatpush.msra.mxu0 %v72
    %104 = vmatpush.msra.mxu0 %v69
    %105 = vmatpush.msra.mxu0 %v66
    %106 = vmatpush.msra.mxu0 %v63
    %107 = vmatpush.msra.mxu0 %v60
    %108 = vmatpush.msra.mxu0 %v57
    %109 = vmatpush.msra.mxu0 %v54
    %110 = vmatpush.msra.mxu0 %v51
    %111 = vmatpush.msra.mxu0 %v48
    %112 = vmatpush.msra.mxu0 %v45
    %113 = vmatpush.msra.mxu0 %v42
    %114 = vmatmul.f32.gmra.mxu0 %v31
    %v115 = vpop.f32.mrf.mxu0
    %v116 = vadd.f32 %v92, %v115
    %117 = vmatmul.f32.gmra.mxu0 %v36
    %v118 = vpop.f32.mrf.mxu0
    %119 = vmatmul.f32.gmra.mxu0 %v41
    %v120 = vpop.f32.mrf.mxu0
    %121 = vdwg.mxu0
    %122 = vmatpush.msra.mxu0 %v88
    %123 = vmatpush.msra.mxu0 %v85
    %124 = vmatpush.msra.mxu0 %v82
    %125 = vmatpush.msra.mxu0 %v79
    %126 = vmatpush.msra.mxu0 %v76
    %127 = vmatpush.msra.mxu0 %v73
    %128 = vmatpush.msra.mxu0 %v70
    %129 = vmatpush.msra.mxu0 %v67
    %130 = vmatpush.msra.mxu0 %v64
    %131 = vmatpush.msra.mxu0 %v61
    %132 = vmatpush.msra.mxu0 %v58
    %133 = vmatpush.msra.mxu0 %v55
    %134 = vmatpush.msra.mxu0 %v52
    %135 = vmatpush.msra.mxu0 %v49
    %136 = vmatpush.msra.mxu0 %v46
    %137 = vmatpush.msra.mxu0 %v43
    %138 = vmatmul.f32.gmra.mxu0 %v31
    %v139 = vpop.f32.mrf.mxu0
    %140 = vmatmul.f32.gmra.mxu0 %v36
    %v141 = vpop.f32.mrf.mxu0
    %v142 = vadd.f32 %v93, %v141
    %143 = vmatmul.f32.gmra.mxu0 %v41
    %v144 = vpop.f32.mrf.mxu0
    %145 = vdwg.mxu0
    %146 = vmatpush.msra.mxu0 %v89
    %147 = vmatpush.msra.mxu0 %v86
    %148 = vmatpush.msra.mxu0 %v83
    %149 = vmatpush.msra.mxu0 %v80
    %150 = vmatpush.msra.mxu0 %v77
    %151 = vmatpush.msra.mxu0 %v74
    %152 = vmatpush.msra.mxu0 %v71
    %153 = vmatpush.msra.mxu0 %v68
    %154 = vmatpush.msra.mxu0 %v65
    %155 = vmatpush.msra.mxu0 %v62
    %156 = vmatpush.msra.mxu0 %v59
    %157 = vmatpush.msra.mxu0 %v56
    %158 = vmatpush.msra.mxu0 %v53
    %159 = vmatpush.msra.mxu0 %v50
    %160 = vmatpush.msra.mxu0 %v47
    %161 = vmatpush.msra.mxu0 %v44
    %162 = vmatmul.f32.gmra.mxu0 %v31
    %v163 = vpop.f32.mrf.mxu0
    %164 = vmatmul.f32.gmra.mxu0 %v36
    %v165 = vpop.f32.mrf.mxu0
    %166 = vmatmul.f32.gmra.mxu0 %v41
    %v167 = vpop.f32.mrf.mxu0
    %v168 = vadd.f32 %v94, %v167
    %169 = vdwg.mxu0
    %v170 = vtanh.pop %v116
    %v171 = vtanh.pop %v142
    %v172 = vtanh.pop %v168
    %v173 = vld [vmem:[%s4] sm:$0xff]
    %v174 = vld [vmem:[%s4 + $0x8] sm:$0xff]
    %v175 = vld [vmem:[%s4 + $0x10] sm:$0xff]
    %v176 = vld [vmem:[%s4 + $0x18] sm:$0xff]
    %v177 = vld [vmem:[%s4 + $0x20] sm:$0xff]
    %v178 = vld [vmem:[%s4 + $0x28] sm:$0xff]
    %v179 = vld [vmem:[%s4 + $0x30] sm:$0xff]
    %v180 = vld [vmem:[%s4 + $0x38] sm:$0xff]
    %v181 = vld [vmem:[%s4 + $0x40] sm:$0xff]
    %v182 = vld [vmem:[%s4 + $0x48] sm:$0xff]
    %v183 = vld [vmem:[%s4 + $0x50] sm:$0xff]
    %v184 = vld [vmem:[%s4 + $0x58] sm:$0xff]
    %v185 = vld [vmem:[%s4 + $0x60] sm:$0xff]
    %v186 = vld [vmem:[%s4 + $0x68] sm:$0xff]
    %v187 = vld [vmem:[%s4 + $0x70] sm:$0xff]
    %v188 = vld [vmem:[%s4 + $0x78] sm:$0xff]
    %v189 = vld [vmem:[%s4 + $0x80] sm:$0xff]
    %v190 = vld [vmem:[%s4 + $0x88] sm:$0xff]
    %v191 = vld [vmem:[%s4 + $0x90] sm:$0xff]
    %v192 = vld [vmem:[%s4 + $0x98] sm:$0xff]
    %v193 = vld [vmem:[%s4 + $0xa0] sm:$0xff]
    %v194 = vld [vmem:[%s4 + $0xa8] sm:$0xff]
    %v195 = vld [vmem:[%s4 + $0xb0] sm:$0xff]
    %v196 = vld [vmem:[%s4 + $0xb8] sm:$0xff]
    %v197 = vld [vmem:[%s4 + $0xc0] sm:$0xff]
    %v198 = vld [vmem:[%s4 + $0xc8] sm:$0xff]
    %v199 = vld [vmem:[%s4 + $0xd0] sm:$0xff]
    %v200 = vld [vmem:[%s4 + $0xd8] sm:$0xff]
    %v201 = vld [vmem:[%s4 + $0xe0] sm:$0xff]
    %v202 = vld [vmem:[%s4 + $0xe8] sm:$0xff]
    %v203 = vld [vmem:[%s4 + $0xf0] sm:$0xff]
    %v204 = vld [vmem:[%s4 + $0xf8] sm:$0xff]
    %v205 = vld [vmem:[%s4 + $0x100] sm:$0xff]
    %v206 = vld [vmem:[%s4 + $0x108] sm:$0xff]
    %v207 = vld [vmem:[%s4 + $0x110] sm:$0xff]
    %v208 = vld [vmem:[%s4 + $0x118] sm:$0xff]
    %v209 = vld [vmem:[%s4 + $0x120] sm:$0xff]
    %v210 = vld [vmem:[%s4 + $0x128] sm:$0xff]
    %v211 = vld [vmem:[%s4 + $0x130] sm:$0xff]
    %v212 = vld [vmem:[%s4 + $0x138] sm:$0xff]
    %v213 = vld [vmem:[%s4 + $0x140] sm:$0xff]
    %v214 = vld [vmem:[%s4 + $0x148] sm:$0xff]
    %v215 = vld [vmem:[%s4 + $0x150] sm:$0xff]
    %v216 = vld [vmem:[%s4 + $0x158] sm:$0xff]
    %v217 = vld [vmem:[%s4 + $0x160] sm:$0xff]
    %v218 = vld [vmem:[%s4 + $0x168] sm:$0xff]
    %v219 = vld [vmem:[%s4 + $0x170] sm:$0xff]
    %v220 = vld [vmem:[%s4 + $0x178] sm:$0xff]
    %v221 = vld [vmem:[%s4 + $0x180] sm:$0xff]
    %v222 = vld [vmem:[%s4 + $0x188] sm:$0xff]
    %v223 = vld [vmem:[%s4 + $0x190] sm:$0xff]
    %v224 = vld [vmem:[%s4 + $0x198] sm:$0xff]
    %v225 = vld [vmem:[%s4 + $0x1a0] sm:$0xff]
    %v226 = vld [vmem:[%s4 + $0x1a8] sm:$0xff]
    %v227 = vld [vmem:[%s4 + $0x1b0] sm:$0xff]
    %v228 = vld [vmem:[%s4 + $0x1b8] sm:$0xff]
    %v229 = vld [vmem:[%s4 + $0x1c0] sm:$0xff]
    %v230 = vld [vmem:[%s4 + $0x1c8] sm:$0xff]
    %v231 = vld [vmem:[%s4 + $0x1d0] sm:$0xff]
    %v232 = vld [vmem:[%s4 + $0x1d8] sm:$0xff]
    %v233 = vld [vmem:[%s4 + $0x1e0] sm:$0xff]
    %v234 = vld [vmem:[%s4 + $0x1e8] sm:$0xff]
    %v235 = vld [vmem:[%s4 + $0x1f0] sm:$0xff]
    %v236 = vld [vmem:[%s4 + $0x1f8] sm:$0xff]
    %v237 = vld [vmem:[%s4 + $0x200] sm:$0xff]
    %v238 = vld [vmem:[%s4 + $0x208] sm:$0xff]
    %v239 = vld [vmem:[%s4 + $0x210] sm:$0xff]
    %v240 = vld [vmem:[%s4 + $0x218] sm:$0xff]
    %v241 = vld [vmem:[%s4 + $0x220] sm:$0xff]
    %v242 = vld [vmem:[%s4 + $0x228] sm:$0xff]
    %v243 = vld [vmem:[%s4 + $0x230] sm:$0xff]
    %v244 = vld [vmem:[%s4 + $0x238] sm:$0xff]
    %v245 = vld [vmem:[%s4 + $0x240] sm:$0xff]
    %v246 = vld [vmem:[%s4 + $0x248] sm:$0xff]
    %v247 = vld [vmem:[%s4 + $0x250] sm:$0xff]
    %v248 = vld [vmem:[%s4 + $0x258] sm:$0xff]
    %v249 = vld [vmem:[%s4 + $0x260] sm:$0xff]
    %v250 = vld [vmem:[%s4 + $0x268] sm:$0xff]
    %v251 = vld [vmem:[%s4 + $0x270] sm:$0xff]
    %v252 = vld [vmem:[%s4 + $0x278] sm:$0xff]
    %v253 = vld [vmem:[%s5] sm:$0x1f]
    %v255 = vperm.slane %v253, 0
    %v256 = vperm.slane %v253, 1
    %v257 = vperm.slane %v253, 2
    %v258 = vperm.slane %v253, 3
    %v259 = vperm.slane %v253, 4
    %265 = vmatpush.msra.mxu0 %v248
    %266 = vmatpush.msra.mxu0 %v243
    %267 = vmatpush.msra.mxu0 %v238
    %268 = vmatpush.msra.mxu0 %v233
    %269 = vmatpush.msra.mxu0 %v228
    %270 = vmatpush.msra.mxu0 %v223
    %271 = vmatpush.msra.mxu0 %v218
    %272 = vmatpush.msra.mxu0 %v213
    %273 = vmatpush.msra.mxu0 %v208
    %274 = vmatpush.msra.mxu0 %v203
    %275 = vmatpush.msra.mxu0 %v198
    %276 = vmatpush.msra.mxu0 %v193
    %277 = vmatpush.msra.mxu0 %v188
    %278 = vmatpush.msra.mxu0 %v183
    %279 = vmatpush.msra.mxu0 %v178
    %280 = vmatpush.msra.mxu0 %v173
    %281 = vmatmul.f32.gmra.mxu0 %v170
    %v282 = vpop.f32.mrf.mxu0
    %v283 = vadd.f32 %v255, %v282
    %284 = vmatmul.f32.gmra.mxu0 %v171
    %v285 = vpop.f32.mrf.mxu0
    %286 = vmatmul.f32.gmra.mxu0 %v172
    %v287 = vpop.f32.mrf.mxu0
    %288 = vdwg.mxu0
    %289 = vmatpush.msra.mxu0 %v249
    %290 = vmatpush.msra.mxu0 %v244
    %291 = vmatpush.msra.mxu0 %v239
    %292 = vmatpush.msra.mxu0 %v234
    %293 = vmatpush.msra.mxu0 %v229
    %294 = vmatpush.msra.mxu0 %v224
    %295 = vmatpush.msra.mxu0 %v219
    %296 = vmatpush.msra.mxu0 %v214
    %297 = vmatpush.msra.mxu0 %v209
    %298 = vmatpush.msra.mxu0 %v204
    %299 = vmatpush.msra.mxu0 %v199
    %300 = vmatpush.msra.mxu0 %v194
    %301 = vmatpush.msra.mxu0 %v189
    %302 = vmatpush.msra.mxu0 %v184
    %303 = vmatpush.msra.mxu0 %v179
    %304 = vmatpush.msra.mxu0 %v174
    %305 = vmatmul.f32.gmra.mxu0 %v170
    %v306 = vpop.f32.mrf.mxu0
    %307 = vmatmul.f32.gmra.mxu0 %v171
    %v308 = vpop.f32.mrf.mxu0
    %v309 = vadd.f32 %v256, %v308
    %310 = vmatmul.f32.gmra.mxu0 %v172
    %v311 = vpop.f32.mrf.mxu0
    %312 = vdwg.mxu0
    %313 = vmatpush.msra.mxu0 %v250
    %314 = vmatpush.msra.mxu0 %v245
    %315 = vmatpush.msra.mxu0 %v240
    %316 = vmatpush.msra.mxu0 %v235
    %317 = vmatpush.msra.mxu0 %v230
    %318 = vmatpush.msra.mxu0 %v225
    %319 = vmatpush.msra.mxu0 %v220
    %320 = vmatpush.msra.mxu0 %v215
    %321 = vmatpush.msra.mxu0 %v210
    %322 = vmatpush.msra.mxu0 %v205
    %323 = vmatpush.msra.mxu0 %v200
    %324 = vmatpush.msra.mxu0 %v195
    %325 = vmatpush.msra.mxu0 %v190
    %326 = vmatpush.msra.mxu0 %v185
    %327 = vmatpush.msra.mxu0 %v180
    %328 = vmatpush.msra.mxu0 %v175
    %329 = vmatmul.f32.gmra.mxu0 %v170
    %v330 = vpop.f32.mrf.mxu0
    %331 = vmatmul.f32.gmra.mxu0 %v171
    %v332 = vpop.f32.mrf.mxu0
    %v333 = vadd.f32 %v257, %v332
    %334 = vmatmul.f32.gmra.mxu0 %v172
    %v335 = vpop.f32.mrf.mxu0
    %336 = vdwg.mxu0
    %337 = vmatpush.msra.mxu0 %v251
    %338 = vmatpush.msra.mxu0 %v246
    %339 = vmatpush.msra.mxu0 %v241
    %340 = vmatpush.msra.mxu0 %v236
    %341 = vmatpush.msra.mxu0 %v231
    %342 = vmatpush.msra.mxu0 %v226
    %343 = vmatpush.msra.mxu0 %v221
    %344 = vmatpush.msra.mxu0 %v216
    %345 = vmatpush.msra.mxu0 %v211
    %346 = vmatpush.msra.mxu0 %v206
    %347 = vmatpush.msra.mxu0 %v201
    %348 = vmatpush.msra.mxu0 %v196
    %349 = vmatpush.msra.mxu0 %v191
    %350 = vmatpush.msra.mxu0 %v186
    %351 = vmatpush.msra.mxu0 %v181
    %352 = vmatpush.msra.mxu0 %v176
    %353 = vmatmul.f32.gmra.mxu0 %v170
    %v354 = vpop.f32.mrf.mxu0
    %355 = vmatmul.f32.gmra.mxu0 %v171
    %v356 = vpop.f32.mrf.mxu0
    %357 = vmatmul.f32.gmra.mxu0 %v172
    %v358 = vpop.f32.mrf.mxu0
    %v359 = vadd.f32 %v258, %v358
    %360 = vdwg.mxu0
    %361 = vmatpush.msra.mxu0 %v252
    %362 = vmatpush.msra.mxu0 %v247
    %363 = vmatpush.msra.mxu0 %v242
    %364 = vmatpush.msra.mxu0 %v237
    %365 = vmatpush.msra.mxu0 %v232
    %366 = vmatpush.msra.mxu0 %v227
    %367 = vmatpush.msra.mxu0 %v222
    %368 = vmatpush.msra.mxu0 %v217
    %369 = vmatpush.msra.mxu0 %v212
    %370 = vmatpush.msra.mxu0 %v207
    %371 = vmatpush.msra.mxu0 %v202
    %372 = vmatpush.msra.mxu0 %v197
    %373 = vmatpush.msra.mxu0 %v192
    %374 = vmatpush.msra.mxu0 %v187
    %375 = vmatpush.msra.mxu0 %v182
    %376 = vmatpush.msra.mxu0 %v177
    %377 = vmatmul.f32.gmra.mxu0 %v170
    %v378 = vpop.f32.mrf.mxu0
    %379 = vmatmul.f32.gmra.mxu0 %v171
    %v380 = vpop.f32.mrf.mxu0
    %381 = vmatmul.f32.gmra.mxu0 %v172
    %v382 = vpop.f32.mrf.mxu0
    %v383 = vadd.f32 %v259, %v382
    %384 = vdwg.mxu0
    %385 = vst [vmem:[#allocation4] sm:$0xff] %v283
    %v386 = vsub.f32 %v27, %v283
    %v387 = vmul.f32 %v386, 0.5
    %v388 = vmul.f32 %v387, %v386
    %v389 = vsub.f32 -0.9189385, %v388
    %v390 = vmul.f32 %v41, 0.48683298
    %v391 = vmul.f32 %v390, %v41
    %v392 = vadd.f32 %v391, 1.1512926
    %v393 = vsub.f32 %v389, %v392
    %v394 = vsub.f32 %v31, %v359
    %v395 = vmul.f32 %v31, 0.01316702
    %v396 = vmul.f32 %v395, %v31
    %v397 = vsub.f32 1.1512926, %v396
    %v398 = vmul.f32 %v383, 0.5
    %v399 = vadd.f32 %v397, %v398
    %v400 = vsub.f32 0.0, %v383
    %v401 = vmul.f32 %v400, 1.442695
    %v402 = vpow.pop %v401
    %v403 = vmul.f32 %v402, 0.5
    %v404 = vmul.f32 %v403, %v394
    %v405 = vmul.f32 %v404, %v394
    %v406 = vadd.f32 %v399, %v405
    %v407 = vsub.f32 %v393, %v406
    %v408 = vsub.f32 %v36, %v309
    %v409 = vmul.f32 %v36, 0.01316702
    %v410 = vmul.f32 %v409, %v36
    %v411 = vsub.f32 1.1512926, %v410
    %v412 = vmul.f32 %v333, 0.5
    %v413 = vadd.f32 %v411, %v412
    %v414 = vsub.f32 0.0, %v333
    %v415 = vmul.f32 %v414, 1.442695
    %v416 = vpow.pop %v415
    %v417 = vmul.f32 %v416, 0.5
    %v418 = vmul.f32 %v417, %v408
    %v419 = vmul.f32 %v418, %v408
    %v420 = vadd.f32 %v413, %v419
    %v421 = vsub.f32 %v407, %v420
    %422 = vadd.xlane.f32.xlu0 %v421
    %v423 = vpop.xlane.xlu0 %422
    %v424 = vrot.slane %v423, 4
    %v425 = vadd.f32 %v423, %v424
    %v426 = vrot.slane %v425, 2
    %v427 = vadd.f32 %v425, %v426
    %v428 = vrot.slane %v427, 1
    %v429 = vadd.f32 %v427, %v428
    %s430 = vtos %v429
    %v431 = vstv %s430
    %v432 = vmul.f32 %v431, -0.125
    %vm433 = vcmask 0
    %434 = vst.msk [vmem:[#allocation2] sm:$0x1] %vm433, %v432
    // Predicated region
    $region26: #{codigem_forward.1} parent=1 // pred_check
      _
    $region27: #{codigem_forward.1} parent=1 // pred_check_branch
      %436 = sbr.rel (0) target = $region29
    $region28: #{codigem_forward.1} parent=1 // pred_region
      %438 = vsyncadd [#allocation3], 0
      %s440 = sshll.u32 [#allocation2], 4
      %s441 = int_to_ptr.vmem [resolvable:$true] %s440
      %s442 = sshll.u32 %s6, 4
      %s443 = int_to_ptr.hbm [resolvable:$true] %s442
      %445 = dma.vmem_to_hbm [thread:$0]  %s441, 16, %s443, [#allocation3]
    $region29: #{codigem_forward.1} parent=1 // pred_fallthru
      _
    // Predicated region
    $region30: #{codigem_forward.1} parent=1 // pred_check
      _
    $region31: #{codigem_forward.1} parent=1 // pred_check_branch
      %447 = sbr.rel (0) target = $region33
    $region32: #{codigem_forward.1} parent=1 // pred_region
      %449 = vsyncadd [#allocation5], 0
      %s451 = sshll.u32 [#allocation4], 4
      %s452 = int_to_ptr.vmem [resolvable:$true] %s451
      %s453 = sshll.u32 %s7, 4
      %s454 = int_to_ptr.hbm [resolvable:$true] %s453
      %456 = dma.vmem_to_hbm [thread:$0]  %s452, 128, %s454, [#allocation5]
    $region33: #{codigem_forward.1} parent=1 // pred_fallthru
      _
    // Predicated region
    $region34: #{codigem_forward.1} parent=1 // pred_check
      _
    $region35: #{codigem_forward.1} parent=1 // pred_check_branch
      %458 = sbr.rel (0) target = $region37
    $region36: #{codigem_forward.1} parent=1 // pred_region
      %460 = dma.done [#allocation3], 16
    $region37: #{codigem_forward.1} parent=1 // pred_fallthru
      _
    // Predicated region
    $region38: #{codigem_forward.1} parent=1 // pred_check
      _
    $region39: #{codigem_forward.1} parent=1 // pred_check_branch
      %462 = sbr.rel (0) target = $region41
    $region40: #{codigem_forward.1} parent=1 // pred_region
      %464 = dma.done [#allocation5], 128
    $region41: #{codigem_forward.1} parent=1 // pred_fallthru
      _
    %465 = vsyncpa [#allocation3], 1
    %466 = vsyncpa [#allocation5], 1

</llo_original>
